<compile_context>
chip_gen: v5e
topology: v5e:2x2
jax: 0.10.0
libtpu: 0.0.40
codegen_flags: <defaults>
</compile_context>

<pallas_src>
import jax
import jax.numpy as jnp
from jax.experimental import pallas as pl
from jax.experimental.pallas import tpu as pltpu


_INV_SQRT2 = 0.7071067811865476


def ffn_kernel(x_ref,
               w1_ref, b1_ref, a1_ref, ab1_ref,
               w2_ref, b2_ref, a2_ref, ab2_ref,
               o_ref,
               acc_ref, lora2_ref):
    """Grid = (row tiles, d_ff slabs). Axis 1 is the reduction over d_ff."""
    j = pl.program_id(1)

    @pl.when(j == 0)
    def _():
        acc_ref[...] = jnp.zeros_like(acc_ref)
        lora2_ref[...] = jnp.zeros_like(lora2_ref)

    x = x_ref[...]                                          # (tm, d_model), bf16

    # ---- linear_in, current d_ff slab:  x @ W1_j + b1_j + (x @ A1) @ (s1*B1)_j ----
    h = jnp.dot(x, w1_ref[...], preferred_element_type=jnp.float32)
    xa1 = jnp.dot(x, a1_ref[...], preferred_element_type=jnp.float32)   # (tm, r) tiny
    h += jnp.dot(xa1.astype(ab1_ref.dtype), ab1_ref[...],
                 preferred_element_type=jnp.float32)
    h += b1_ref[...]                                        # f32 bias broadcast

    # ---- exact (erf) GELU in f32 ----
    h = 0.5 * h * (1.0 + jax.lax.erf(h * _INV_SQRT2))

    hb = h.astype(w2_ref.dtype)                             # bf16 operand for MXU

    # ---- linear_out partial products, accumulated over d_ff slabs ----
    acc_ref[...] += jnp.dot(hb, w2_ref[...], preferred_element_type=jnp.float32)
    lora2_ref[...] += jnp.dot(hb, a2_ref[...], preferred_element_type=jnp.float32)

    @pl.when(j == pl.num_programs(1) - 1)
    def _():
        y = acc_ref[...]
        y += jnp.dot(lora2_ref[...].astype(ab2_ref.dtype), ab2_ref[...],
                     preferred_element_type=jnp.float32)
        y += b2_ref[...]
        o_ref[...] = y.astype(o_ref.dtype)


def ffn_pallas(x, params, *, tm=256, tf=512, compute_dtype=jnp.bfloat16):
    """x: (batch, seq, d_model) -> (batch, seq, d_model)"""
    (w1, b1, a1, ab1, s1), (w2, b2, a2, ab2, s2) = params
    batch, seq, d_model = x.shape
    d_ff = w1.shape[1]
    r = a1.shape[1]
    out_dtype = x.dtype

    # --- row tiling: pad M so any batch*seq works; 16-sublane granule for bf16 ---
    M = batch * seq
    tm = max(16, (int(tm) // 16) * 16)
    tm_eff = min(tm, ((M + 15) // 16) * 16)
    M_pad = ((M + tm_eff - 1) // tm_eff) * tm_eff

    # --- d_ff slab tiling: keeps the per-step W1/W2 VMEM footprint bounded ---
    tf_eff = tf if (d_ff > tf and d_ff % tf == 0) else d_ff

    x2d = x.reshape(M, d_model)
    if M_pad != M:
        x2d = jnp.pad(x2d, ((0, M_pad - M), (0, 0)))
    x2d = x2d.astype(compute_dtype)

    # bf16 matmul operands; LoRA scaling folded into B; biases stay f32.
    w1c = w1.astype(compute_dtype)
    a1c = a1.astype(compute_dtype)
    ab1c = (ab1 * s1).astype(compute_dtype)
    w2c = w2.astype(compute_dtype)
    a2c = a2.astype(compute_dtype)
    ab2c = (ab2 * s2).astype(compute_dtype)
    b1c = b1.astype(jnp.float32)
    b2c = b2.astype(jnp.float32)

    grid = (M_pad // tm_eff, d_ff // tf_eff)

    nbytes = lambda a: a.size * a.dtype.itemsize
    cost = pl.CostEstimate(
        flops=4 * M_pad * d_model * d_ff + 4 * M_pad * r * (d_model + d_ff),
        transcendentals=M_pad * d_ff,
        bytes_accessed=(nbytes(x2d) + M_pad * d_model * jnp.dtype(out_dtype).itemsize
                        + sum(nbytes(a) for a in
                              (w1c, b1c, a1c, ab1c, w2c, b2c, a2c, ab2c))))

    out2d = pl.pallas_call(
        ffn_kernel,
        out_shape=jax.ShapeDtypeStruct((M_pad, d_model), out_dtype),
        grid_spec=pltpu.PrefetchScalarGridSpec(
            num_scalar_prefetch=0,
            grid=grid,
            in_specs=[
                pl.BlockSpec((tm_eff, d_model), lambda i, j: (i, 0)),   # x rows
                pl.BlockSpec((d_model, tf_eff), lambda i, j: (0, j)),   # W1 slab
                pl.BlockSpec((1, tf_eff),       lambda i, j: (0, j)),   # b1 slab
                pl.BlockSpec((d_model, r),      lambda i, j: (0, 0)),   # A1
                pl.BlockSpec((r, tf_eff),       lambda i, j: (0, j)),   # s1*B1 slab
                pl.BlockSpec((tf_eff, d_model), lambda i, j: (j, 0)),   # W2 slab
                pl.BlockSpec((1, d_model),      lambda i, j: (0, 0)),   # b2
                pl.BlockSpec((tf_eff, r),       lambda i, j: (j, 0)),   # A2 slab
                pl.BlockSpec((r, d_model),      lambda i, j: (0, 0)),   # s2*B2
            ],
            out_specs=pl.BlockSpec((tm_eff, d_model), lambda i, j: (i, 0)),
            scratch_shapes=[
                pltpu.VMEM((tm_eff, d_model), jnp.float32),   # y accumulator
                pltpu.VMEM((tm_eff, r), jnp.float32),         # (h @ A2) accumulator
            ]),
        compiler_params=pltpu.CompilerParams(
            dimension_semantics=("parallel", "arbitrary"),
            vmem_limit_bytes=64 * 1024 * 1024),
        cost_estimate=cost,
    )(x2d, w1c, b1c, a1c, ab1c, w2c, b2c, a2c, ab2c)

    return out2d[:M].reshape(batch, seq, d_model)


def ffn_reference(x, params):
    """Plain-JAX f32 reference mirroring the PyTorch module."""
    (w1, b1, a1, ab1, s1), (w2, b2, a2, ab2, s2) = params
    h = x @ w1 + b1 + (x @ a1 @ ab1) * s1
    h = 0.5 * h * (1.0 + jax.lax.erf(h / jnp.sqrt(2.0)))
    y = h @ w2 + b2 + (h @ a2 @ ab2) * s2
    return y


def init_params(key, d_model, d_ff, r):
    """Deterministic synthetic parameters (shapes match the PyTorch module)."""
    ks = jax.random.split(key, 8)
    scale_in = 1.0 / jnp.sqrt(d_model)
    scale_ff = 1.0 / jnp.sqrt(d_ff)
    # weights stored as (in, out)  ==  PyTorch weight.T
    w1 = jax.random.normal(ks[0], (d_model, d_ff), jnp.float32) * scale_in
    b1 = jax.random.normal(ks[1], (1, d_ff), jnp.float32) * 0.02
    a1 = jax.random.normal(ks[2], (d_model, r), jnp.float32) * scale_in
    ab1 = jax.random.normal(ks[3], (r, d_ff), jnp.float32) * 0.02
    w2 = jax.random.normal(ks[4], (d_ff, d_model), jnp.float32) * scale_ff
    b2 = jax.random.normal(ks[5], (1, d_model), jnp.float32) * 0.02
    a2 = jax.random.normal(ks[6], (d_ff, r), jnp.float32) * scale_ff
    ab2 = jax.random.normal(ks[7], (r, d_model), jnp.float32) * 0.02
    scaling = 1.0  # alpha = r by default -> alpha / r = 1
    return ((w1, b1, a1, ab1, scaling), (w2, b2, a2, ab2, scaling))


if __name__ == "__main__":
    batch, seq, d_model, d_ff, r = 2, 8, 32, 64, 4

    key = jax.random.PRNGKey(0)
    kx, kp = jax.random.split(key)
    x = jax.random.normal(kx, (batch, seq, d_model), jnp.float32)
    params = init_params(kp, d_model, d_ff, r)

    out = jax.block_until_ready(ffn_pallas(x, params))
    ref = ffn_reference(x, params)

    assert out.shape == (batch, seq, d_model)
    assert out.dtype == x.dtype
    # bf16 matmul operands with f32 accumulation -> loosened tolerance vs f32 ref
    err = float(jnp.max(jnp.abs(out - ref)))
    assert jnp.allclose(out, ref, atol=5e-2, rtol=5e-2), f"mismatch, max abs err={err}"

    print("KERNEL_OK")
</pallas_src>

<mosaic_0001>
module attributes {stable_mosaic.version = 11 : i64} {
  func.func @ffn_kernel(%arg0: i32, %arg1: i32, %arg2: memref<16x32xbf16, #tpu.memory_space<vmem>>, %arg3: memref<32x64xbf16, #tpu.memory_space<vmem>>, %arg4: memref<1x64xf32, #tpu.memory_space<vmem>>, %arg5: memref<32x4xbf16, #tpu.memory_space<vmem>>, %arg6: memref<4x64xbf16, #tpu.memory_space<vmem>>, %arg7: memref<64x32xbf16, #tpu.memory_space<vmem>>, %arg8: memref<1x32xf32, #tpu.memory_space<vmem>>, %arg9: memref<64x4xbf16, #tpu.memory_space<vmem>>, %arg10: memref<4x32xbf16, #tpu.memory_space<vmem>>, %arg11: memref<16x32xf32, #tpu.memory_space<vmem>>, %arg12: memref<16x32xf32, #tpu.memory_space<vmem>>, %arg13: memref<16x4xf32, #tpu.memory_space<vmem>>) attributes {dimension_semantics = [#tpu.dimension_semantics<parallel>, #tpu.dimension_semantics<arbitrary>], iteration_bounds = array<i64: 1, 1>, scalar_prefetch = 0 : i64, scratch_operands = 2 : i64, tpu.core_type = #tpu.core_type<tc>, window_params = [{transform_indices = @transform_0, window_bounds = array<i64: 16, 32>}, {transform_indices = @transform_1, window_bounds = array<i64: 32, 64>}, {transform_indices = @transform_2, window_bounds = array<i64: 1, 64>}, {pipeline_mode = #tpu.pipeline_mode<synchronous>, transform_indices = @transform_3, window_bounds = array<i64: 32, 4>}, {transform_indices = @transform_4, window_bounds = array<i64: 4, 64>}, {transform_indices = @transform_5, window_bounds = array<i64: 64, 32>}, {pipeline_mode = #tpu.pipeline_mode<synchronous>, transform_indices = @transform_6, window_bounds = array<i64: 1, 32>}, {transform_indices = @transform_7, window_bounds = array<i64: 64, 4>}, {pipeline_mode = #tpu.pipeline_mode<synchronous>, transform_indices = @transform_8, window_bounds = array<i64: 4, 32>}, {transform_indices = @transform_9, window_bounds = array<i64: 16, 32>}]} {
    %c0_i32 = arith.constant 0 : i32
    %0 = arith.cmpi eq, %arg1, %c0_i32 : i32
    %1 = arith.extui %0 : i1 to i32
    %c0_i32_0 = arith.constant 0 : i32
    %2 = arith.cmpi ne, %1, %c0_i32_0 : i32
    scf.if %2 {
      %cst_31 = arith.constant 0.000000e+00 : f32
      %37 = vector.broadcast %cst_31 : f32 to vector<16x32xf32>
      %c0_32 = arith.constant 0 : index
      %c0_33 = arith.constant 0 : index
      %38 = vector.load %arg12[%c0_32, %c0_33] : memref<16x32xf32, #tpu.memory_space<vmem>>, vector<16x32xf32>
      tpu.vector_store %arg12[%c0_32, %c0_33], %37 {strides = array<i32>} : memref<16x32xf32, #tpu.memory_space<vmem>>, vector<16x32xf32>,
      %cst_34 = arith.constant 0.000000e+00 : f32
      %39 = vector.broadcast %cst_34 : f32 to vector<16x4xf32>
      %c0_35 = arith.constant 0 : index
      %c0_36 = arith.constant 0 : index
      %40 = vector.load %arg13[%c0_35, %c0_36] : memref<16x4xf32, #tpu.memory_space<vmem>>, vector<16x4xf32>
      tpu.vector_store %arg13[%c0_35, %c0_36], %39 {strides = array<i32>} : memref<16x4xf32, #tpu.memory_space<vmem>>, vector<16x4xf32>,
    } else {
    }
    %c0 = arith.constant 0 : index
    %c0_1 = arith.constant 0 : index
    %3 = vector.load %arg2[%c0, %c0_1] : memref<16x32xbf16, #tpu.memory_space<vmem>>, vector<16x32xbf16>
    %c0_2 = arith.constant 0 : index
    %c0_3 = arith.constant 0 : index
    %4 = vector.load %arg3[%c0_2, %c0_3] : memref<32x64xbf16, #tpu.memory_space<vmem>>, vector<32x64xbf16>
    %cst = arith.constant dense<0.000000e+00> : vector<16x64xf32>
    %5 = tpu.matmul %3, %4, %cst {dimension_numbers = #tpu.dot_dimension_numbers<[1], [0], [0], [1], [0, 0, 1, 1], [], []>} : vector<16x32xbf16>, vector<32x64xbf16>, vector<16x64xf32> -> vector<16x64xf32>
    %c0_4 = arith.constant 0 : index
    %c0_5 = arith.constant 0 : index
    %6 = vector.load %arg5[%c0_4, %c0_5] : memref<32x4xbf16, #tpu.memory_space<vmem>>, vector<32x4xbf16>
    %cst_6 = arith.constant dense<0.000000e+00> : vector<16x4xf32>
    %7 = tpu.matmul %3, %6, %cst_6 {dimension_numbers = #tpu.dot_dimension_numbers<[1], [0], [0], [1], [0, 0, 1, 1], [], []>} : vector<16x32xbf16>, vector<32x4xbf16>, vector<16x4xf32> -> vector<16x4xf32>
    %8 = arith.truncf %7 : vector<16x4xf32> to vector<16x4xbf16>
    %c0_7 = arith.constant 0 : index
    %c0_8 = arith.constant 0 : index
    %9 = vector.load %arg6[%c0_7, %c0_8] : memref<4x64xbf16, #tpu.memory_space<vmem>>, vector<4x64xbf16>
    %cst_9 = arith.constant dense<0.000000e+00> : vector<16x64xf32>
    %10 = tpu.matmul %8, %9, %cst_9 {dimension_numbers = #tpu.dot_dimension_numbers<[1], [0], [0], [1], [0, 0, 1, 1], [], []>} : vector<16x4xbf16>, vector<4x64xbf16>, vector<16x64xf32> -> vector<16x64xf32>
    %11 = arith.addf %5, %10 : vector<16x64xf32>
    %c0_10 = arith.constant 0 : index
    %c0_11 = arith.constant 0 : index
    %12 = vector.load %arg4[%c0_10, %c0_11] : memref<1x64xf32, #tpu.memory_space<vmem>>, vector<1x64xf32>
    %13 = vector.broadcast %12 : vector<1x64xf32> to vector<16x64xf32>
    %14 = arith.addf %11, %13 : vector<16x64xf32>
    %cst_12 = arith.constant 5.000000e-01 : f32
    %15 = vector.broadcast %cst_12 : f32 to vector<16x64xf32>
    %16 = arith.mulf %15, %14 : vector<16x64xf32>
    %cst_13 = arith.constant 0.707106769 : f32
    %17 = vector.broadcast %cst_13 : f32 to vector<16x64xf32>
    %18 = arith.mulf %14, %17 : vector<16x64xf32>
    %19 = math.erf %18 : vector<16x64xf32>
    %cst_14 = arith.constant 1.000000e+00 : f32
    %20 = vector.broadcast %cst_14 : f32 to vector<16x64xf32>
    %21 = arith.addf %20, %19 : vector<16x64xf32>
    %22 = arith.mulf %16, %21 : vector<16x64xf32>
    %23 = arith.truncf %22 : vector<16x64xf32> to vector<16x64xbf16>
    %c0_15 = arith.constant 0 : index
    %c0_16 = arith.constant 0 : index
    %24 = vector.load %arg12[%c0_15, %c0_16] : memref<16x32xf32, #tpu.memory_space<vmem>>, vector<16x32xf32>
    %c0_17 = arith.constant 0 : index
    %c0_18 = arith.constant 0 : index
    %25 = vector.load %arg7[%c0_17, %c0_18] : memref<64x32xbf16, #tpu.memory_space<vmem>>, vector<64x32xbf16>
    %cst_19 = arith.constant dense<0.000000e+00> : vector<16x32xf32>
    %26 = tpu.matmul %23, %25, %cst_19 {dimension_numbers = #tpu.dot_dimension_numbers<[1], [0], [0], [1], [0, 0, 1, 1], [], []>} : vector<16x64xbf16>, vector<64x32xbf16>, vector<16x32xf32> -> vector<16x32xf32>
    %27 = arith.addf %24, %26 : vector<16x32xf32>
    %c0_20 = arith.constant 0 : index
    %c0_21 = arith.constant 0 : index
    %28 = vector.load %arg12[%c0_20, %c0_21] : memref<16x32xf32, #tpu.memory_space<vmem>>, vector<16x32xf32>
    tpu.vector_store %arg12[%c0_20, %c0_21], %27 {strides = array<i32>} : memref<16x32xf32, #tpu.memory_space<vmem>>, vector<16x32xf32>,
    %c0_22 = arith.constant 0 : index
    %c0_23 = arith.constant 0 : index
    %29 = vector.load %arg13[%c0_22, %c0_23] : memref<16x4xf32, #tpu.memory_space<vmem>>, vector<16x4xf32>
    %c0_24 = arith.constant 0 : index
    %c0_25 = arith.constant 0 : index
    %30 = vector.load %arg9[%c0_24, %c0_25] : memref<64x4xbf16, #tpu.memory_space<vmem>>, vector<64x4xbf16>
    %cst_26 = arith.constant dense<0.000000e+00> : vector<16x4xf32>
    %31 = tpu.matmul %23, %30, %cst_26 {dimension_numbers = #tpu.dot_dimension_numbers<[1], [0], [0], [1], [0, 0, 1, 1], [], []>} : vector<16x64xbf16>, vector<64x4xbf16>, vector<16x4xf32> -> vector<16x4xf32>
    %32 = arith.addf %29, %31 : vector<16x4xf32>
    %c0_27 = arith.constant 0 : index
    %c0_28 = arith.constant 0 : index
    %33 = vector.load %arg13[%c0_27, %c0_28] : memref<16x4xf32, #tpu.memory_space<vmem>>, vector<16x4xf32>
    tpu.vector_store %arg13[%c0_27, %c0_28], %32 {strides = array<i32>} : memref<16x4xf32, #tpu.memory_space<vmem>>, vector<16x4xf32>,
    %c0_i32_29 = arith.constant 0 : i32
    %34 = arith.cmpi eq, %arg1, %c0_i32_29 : i32
    %35 = arith.extui %34 : i1 to i32
    %c0_i32_30 = arith.constant 0 : i32
    %36 = arith.cmpi ne, %35, %c0_i32_30 : i32
    scf.if %36 {
      %c0_31 = arith.constant 0 : index
      %c0_32 = arith.constant 0 : index
      %37 = vector.load %arg12[%c0_31, %c0_32] : memref<16x32xf32, #tpu.memory_space<vmem>>, vector<16x32xf32>
      %c0_33 = arith.constant 0 : index
      %c0_34 = arith.constant 0 : index
      %38 = vector.load %arg13[%c0_33, %c0_34] : memref<16x4xf32, #tpu.memory_space<vmem>>, vector<16x4xf32>
      %39 = arith.truncf %38 : vector<16x4xf32> to vector<16x4xbf16>
      %c0_35 = arith.constant 0 : index
      %c0_36 = arith.constant 0 : index
      %40 = vector.load %arg10[%c0_35, %c0_36] : memref<4x32xbf16, #tpu.memory_space<vmem>>, vector<4x32xbf16>
      %cst_37 = arith.constant dense<0.000000e+00> : vector<16x32xf32>
      %41 = tpu.matmul %39, %40, %cst_37 {dimension_numbers = #tpu.dot_dimension_numbers<[1], [0], [0], [1], [0, 0, 1, 1], [], []>} : vector<16x4xbf16>, vector<4x32xbf16>, vector<16x32xf32> -> vector<16x32xf32>
      %42 = arith.addf %37, %41 : vector<16x32xf32>
      %c0_38 = arith.constant 0 : index
      %c0_39 = arith.constant 0 : index
      %43 = vector.load %arg8[%c0_38, %c0_39] : memref<1x32xf32, #tpu.memory_space<vmem>>, vector<1x32xf32>
      %44 = vector.broadcast %43 : vector<1x32xf32> to vector<16x32xf32>
      %45 = arith.addf %42, %44 : vector<16x32xf32>
      %c0_40 = arith.constant 0 : index
      %c0_41 = arith.constant 0 : index
      %46 = vector.load %arg11[%c0_40, %c0_41] : memref<16x32xf32, #tpu.memory_space<vmem>>, vector<16x32xf32>
      tpu.vector_store %arg11[%c0_40, %c0_41], %45 {strides = array<i32>} : memref<16x32xf32, #tpu.memory_space<vmem>>, vector<16x32xf32>,
    } else {
    }
    return
  }
  func.func @transform_0(%arg0: i32, %arg1: i32) -> (i32, i32) {
    %c0_i32 = arith.constant 0 : i32
    %c0_i32_0 = arith.constant 0 : i32
    return %arg0, %c0_i32 : i32, i32
  }
  func.func @transform_1(%arg0: i32, %arg1: i32) -> (i32, i32) {
    %c0_i32 = arith.constant 0 : i32
    %c0_i32_0 = arith.constant 0 : i32
    return %c0_i32, %arg1 : i32, i32
  }
  func.func @transform_2(%arg0: i32, %arg1: i32) -> (i32, i32) {
    %c0_i32 = arith.constant 0 : i32
    %c0_i32_0 = arith.constant 0 : i32
    return %c0_i32, %arg1 : i32, i32
  }
  func.func @transform_3(%arg0: i32, %arg1: i32) -> (i32, i32) {
    %c0_i32 = arith.constant 0 : i32
    %c0_i32_0 = arith.constant 0 : i32
    %c0_i32_1 = arith.constant 0 : i32
    return %c0_i32, %c0_i32_0 : i32, i32
  }
  func.func @transform_4(%arg0: i32, %arg1: i32) -> (i32, i32) {
    %c0_i32 = arith.constant 0 : i32
    %c0_i32_0 = arith.constant 0 : i32
    return %c0_i32, %arg1 : i32, i32
  }
  func.func @transform_5(%arg0: i32, %arg1: i32) -> (i32, i32) {
    %c0_i32 = arith.constant 0 : i32
    %c0_i32_0 = arith.constant 0 : i32
    return %arg1, %c0_i32 : i32, i32
  }
  func.func @transform_6(%arg0: i32, %arg1: i32) -> (i32, i32) {
    %c0_i32 = arith.constant 0 : i32
    %c0_i32_0 = arith.constant 0 : i32
    %c0_i32_1 = arith.constant 0 : i32
    return %c0_i32, %c0_i32_0 : i32, i32
  }
  func.func @transform_7(%arg0: i32, %arg1: i32) -> (i32, i32) {
    %c0_i32 = arith.constant 0 : i32
    %c0_i32_0 = arith.constant 0 : i32
    return %arg1, %c0_i32 : i32, i32
  }
  func.func @transform_8(%arg0: i32, %arg1: i32) -> (i32, i32) {
    %c0_i32 = arith.constant 0 : i32
    %c0_i32_0 = arith.constant 0 : i32
    %c0_i32_1 = arith.constant 0 : i32
    return %c0_i32, %c0_i32_0 : i32, i32
  }
  func.func @transform_9(%arg0: i32, %arg1: i32) -> (i32, i32) {
    %c0_i32 = arith.constant 0 : i32
    %c0_i32_0 = arith.constant 0 : i32
    return %arg0, %c0_i32 : i32, i32
  }
}

</mosaic_0001>

<llo_original>
// kernel: tpu_custom_call.1
$region0: #{tpu_custom_call.1}
  #allocation0 [shape = 'u32[]', space=smem, size = 0x4, offset = 0x4, fixed_abs, tag = 'smem constant byte address 0x4 - core index']
  #allocation1 [shape = 'u32[72,128]{1,0:T(1,128)}', space=vmem, size = 0x9000, scoped, tag = 'internal scratch']
  #allocation2 [shape = 'f32[16,32]{1,0:T(8,128)}', space=vmem, size = 0x2000, scoped, tag = 'scratch operand']
  #allocation3 [shape = 'f32[16,4]{1,0:T(8,128)}', space=vmem, size = 0x2000, scoped, tag = 'scratch operand']
  %s0 = inlined_call_operand.vmem [shape: bf16[16,32], index: 0, kind: input, shape index: {}]
  %s1 = inlined_call_operand.vmem [shape: bf16[32,64], index: 1, kind: input, shape index: {}]
  %s2 = inlined_call_operand.vmem [shape: f32[1,64], index: 2, kind: input, shape index: {}]
  %s3 = inlined_call_operand.vmem [shape: bf16[32,4], index: 3, kind: input, shape index: {}]
  %s4 = inlined_call_operand.vmem [shape: bf16[4,64], index: 4, kind: input, shape index: {}]
  %s5 = inlined_call_operand.vmem [shape: bf16[64,32], index: 5, kind: input, shape index: {}]
  %s6 = inlined_call_operand.vmem [shape: f32[1,32], index: 6, kind: input, shape index: {}]
  %s7 = inlined_call_operand.vmem [shape: bf16[64,4], index: 7, kind: input, shape index: {}]
  %s8 = inlined_call_operand.vmem [shape: bf16[4,32], index: 8, kind: input, shape index: {}]
  %s9 = inlined_call_operand.hbm [shape: f32[16,32], index: 9, kind: output, shape index: {}]
  %s10 = sld [smem:[#allocation0]]
  $region54: #{tpu_custom_call.1} parent=0
    _
  %s12 = ssub.s32 1, %s10
  %s13 = scalar_select 0, %s12, %s10
  $region1: #{tpu_custom_call.1} parent=0
    #allocation4 [shape = 'u8[8192]{0}', space=vmem, size = 0x2000, scoped, tag = 'output window, operand 0, single buffered']
    #allocation5 [shape = 's32[1]{0}', space=sflag, size = 0x4, scoped, tag = 'scoped memory for tpu_custom_call.1']
    %14 = vsyncpa [#allocation5], 0
    // Predicated region
    $region2: #{tpu_custom_call.1} parent=1 // pred_check
      _
    $region3: #{tpu_custom_call.1} parent=1 // pred_check_branch
      %16 = sbr.rel (0) target = $region5
    $region4: #{tpu_custom_call.1} parent=1 // pred_region
      _
    $region5: #{tpu_custom_call.1} parent=1 // pred_fallthru
      _
    // Predicated region
    $region6: #{tpu_custom_call.1} parent=1 // pred_check
      _
    $region7: #{tpu_custom_call.1} parent=1 // pred_check_branch
      %18 = sbr.rel (0) target = $region9
    $region8: #{tpu_custom_call.1} parent=1 // pred_region
      _
    $region9: #{tpu_custom_call.1} parent=1 // pred_fallthru
      _
    // Predicated region
    $region10: #{tpu_custom_call.1} parent=1 // pred_check
      _
    $region11: #{tpu_custom_call.1} parent=1 // pred_check_branch
      %20 = sbr.rel (0) target = $region13
    $region12: #{tpu_custom_call.1} parent=1 // pred_region
      _
    $region13: #{tpu_custom_call.1} parent=1 // pred_fallthru
      _
    // Predicated region
    $region14: #{tpu_custom_call.1} parent=1 // pred_check
      _
    $region15: #{tpu_custom_call.1} parent=1 // pred_check_branch
      %22 = sbr.rel (0) target = $region17
    $region16: #{tpu_custom_call.1} parent=1 // pred_region
      _
    $region17: #{tpu_custom_call.1} parent=1 // pred_fallthru
      _
    // Predicated region
    $region18: #{tpu_custom_call.1} parent=1 // pred_check
      _
    $region19: #{tpu_custom_call.1} parent=1 // pred_check_branch
      %24 = sbr.rel (0) target = $region21
    $region20: #{tpu_custom_call.1} parent=1 // pred_region
      _
    $region21: #{tpu_custom_call.1} parent=1 // pred_fallthru
      _
    // Predicated region
    $region22: #{tpu_custom_call.1} parent=1 // pred_check
      _
    $region23: #{tpu_custom_call.1} parent=1 // pred_check_branch
      %26 = sbr.rel (0) target = $region25
    $region24: #{tpu_custom_call.1} parent=1 // pred_region
      _
    $region25: #{tpu_custom_call.1} parent=1 // pred_fallthru
      _
    // Predicated region
    $region26: #{tpu_custom_call.1} parent=1 // pred_check
      _
    $region27: #{tpu_custom_call.1} parent=1 // pred_check_branch
      %28 = sbr.rel (0) target = $region29
    $region28: #{tpu_custom_call.1} parent=1 // pred_region
      _
    $region29: #{tpu_custom_call.1} parent=1 // pred_fallthru
      _
    // Predicated region
    $region30: #{tpu_custom_call.1} parent=1 // pred_check
      _
    $region31: #{tpu_custom_call.1} parent=1 // pred_check_branch
      %30 = sbr.rel (0) target = $region33
    $region32: #{tpu_custom_call.1} parent=1 // pred_region
      _
    $region33: #{tpu_custom_call.1} parent=1 // pred_fallthru
      _
    // Predicated region
    $region34: #{tpu_custom_call.1} parent=1 // pred_check
      _
    $region35: #{tpu_custom_call.1} parent=1 // pred_check_branch
      %32 = sbr.rel (0) target = $region37
    $region36: #{tpu_custom_call.1} parent=1 // pred_region
      _
    $region37: #{tpu_custom_call.1} parent=1 // pred_fallthru
      _
    %p34 = scmp.eq.s32.totalorder 0, 0
    // Predicated region
    $region38: #{tpu_custom_call.1} parent=1 // pred_check
      %p35 = pneg %p34
    $region39: #{tpu_custom_call.1} parent=1 // pred_check_branch
      %37 = sbr.rel (%p35) target = $region41
    $region40: #{tpu_custom_call.1} parent=1 // pred_region
      %vm38 = vcmask 261120
      %39 = vst.msk [vmem:[#allocation2] sm:$0xff] %vm38, 0.0
      %40 = vst.msk [vmem:[#allocation2 + $0x8] sm:$0xff] %vm38, 0.0
      %vm41 = vcmask 31744
      %42 = vst.msk [vmem:[#allocation3] sm:$0xff] %vm41, 0.0
      %43 = vst.msk [vmem:[#allocation3 + $0x8] sm:$0xff] %vm41, 0.0
    $region41: #{tpu_custom_call.1} parent=1 // pred_fallthru
      _
    %v44 = vld [vmem:[%s0] sm:$0xf]
    %v45 = vld [vmem:[%s0 + $0x4] sm:$0xf]
    %v46 = vld [vmem:[%s1] sm:$0xf]
    %v47 = vld [vmem:[%s1 + $0x4] sm:$0xf]
    %v48 = vld [vmem:[%s1 + $0x8] sm:$0xf]
    %v49 = vld [vmem:[%s1 + $0xc] sm:$0xf]
    %v50 = vld [vmem:[%s3] sm:$0xf]
    %v51 = vld [vmem:[%s3 + $0x4] sm:$0xf]
    %v52 = vld [vmem:[%s3 + $0x8] sm:$0xf]
    %v53 = vld [vmem:[%s3 + $0xc] sm:$0xf]
    %v56 = vunpack.c.l.b16 %v44
    %v57 = vunpack.c.l.b16 %v45
    %v58 = vpack.c.b16 %v57, %v56
    %v63 = vunpack.c.l.b16 %v50
    %v64 = vunpack.c.l.b16 %v51
    %v65 = vunpack.c.l.b16 %v52
    %v66 = vunpack.c.l.b16 %v53
    %v67 = vpack.c.b16 %v64, %v63
    %v68 = vpack.c.b16 %v66, %v65
    %vm71 = vcmask 261120
    %v73 = vsel %vm71, %v58, 0
    %75 = vmatpush.bf16.msra.mxu0 0
    %76 = vmatpush.bf16.msra.mxu0 0
    %77 = vmatpush.bf16.msra.mxu0 0
    %78 = vmatpush.bf16.msra.mxu0 0
    %79 = vmatpush.bf16.msra.mxu0 0
    %80 = vmatpush.bf16.msra.mxu0 0
    %81 = vmatpush.bf16.msra.mxu0 %v68
    %82 = vmatpush.bf16.msra.mxu0 %v67
    %83 = vmatmul.bf16.gmra.mxu0 %v73
    %v84 = vpop.f32.mrf.mxu0
    %v85 = vadd.f32 0.0, %v84
    %v86 = vpop.f32.mrf.mxu0
    %v87 = vadd.f32 0.0, %v86
    %88 = vdwg.mxu0
    %v89 = vpack.c.bf16 %v87, %v85
    %v90 = vld [vmem:[%s4] sm:$0x3]
    %vm91 = vcmask 31744
    %v93 = vsel %vm91, %v89, 0
    %vm95 = vcmask 1041408
    %v97 = vsel %vm95, %v90, 0
    %99 = vmatpush.bf16.msra.mxu0 0
    %100 = vmatpush.bf16.msra.mxu0 0
    %101 = vmatpush.bf16.msra.mxu0 0
    %102 = vmatpush.bf16.msra.mxu0 0
    %103 = vmatpush.bf16.msra.mxu0 0
    %104 = vmatpush.bf16.msra.mxu0 0
    %105 = vmatpush.bf16.msra.mxu0 0
    %106 = vmatpush.bf16.msra.mxu0 %v97
    %107 = vmatmul.bf16.gmra.mxu0 %v93
    %v108 = vpop.f32.mrf.mxu0
    %v109 = vadd.f32 0.0, %v108
    %v110 = vpop.f32.mrf.mxu0
    %v111 = vadd.f32 0.0, %v110
    %112 = vdwg.mxu0
    %v117 = vunpack.c.l.b16 %v46
    %v118 = vunpack.c.l.b16 %v47
    %v119 = vunpack.c.l.b16 %v48
    %v120 = vunpack.c.l.b16 %v49
    %v121 = vpack.c.b16 %v118, %v117
    %v122 = vpack.c.b16 %v120, %v119
    %125 = vmatpush.bf16.msra.mxu0 0
    %126 = vmatpush.bf16.msra.mxu0 0
    %127 = vmatpush.bf16.msra.mxu0 0
    %128 = vmatpush.bf16.msra.mxu0 0
    %129 = vmatpush.bf16.msra.mxu0 0
    %130 = vmatpush.bf16.msra.mxu0 0
    %131 = vmatpush.bf16.msra.mxu0 %v122
    %132 = vmatpush.bf16.msra.mxu0 %v121
    %133 = vmatmul.bf16.gmra.mxu0 %v73
    %v134 = vpop.f32.mrf.mxu0
    %v135 = vadd.f32 %v109, %v134
    %v136 = vpop.f32.mrf.mxu0
    %v137 = vadd.f32 %v111, %v136
    %138 = vdwg.mxu0
    %v139 = vld [vmem:[%s2] sm:$0x1]
    %v141 = vperm.slane %v139, 0
    %v143 = vadd.f32 %v135, %v141
    %v144 = vadd.f32 %v137, %v141
    %v145 = vmul.f32 %v143, 0.5
    %v146 = vmul.f32 %v144, 0.5
    %v147 = vmul.f32 %v143, 0.70710677
    %v148 = vmul.f32 %v144, 0.70710677
    %v149 = vmul.f32 %v147, %v147
    %v150 = vmin.f32 16.0, %v149
    %v151 = vmul.f32 %v150, 2.1237322e-06
    %v152 = vadd.f32 %v151, 0.00028619796
    %v153 = vmul.f32 %v150, %v152
    %v154 = vadd.f32 %v153, 0.0036580483
    %v155 = vmul.f32 %v150, %v154
    %v156 = vadd.f32 %v155, 0.05243302
    %v157 = vmul.f32 %v150, %v156
    %v158 = vadd.f32 %v157, 0.18741608
    %v159 = vmul.f32 %v150, %v158
    %v160 = vadd.f32 %v159, 1.1283791
    %v161 = vmul.f32 %v147, %v160
    %v162 = vmul.f32 %v150, 3.8918573e-05
    %v163 = vadd.f32 %v162, 0.001143296
    %v164 = vmul.f32 %v150, %v163
    %v165 = vadd.f32 %v164, 0.014752088
    %v166 = vmul.f32 %v150, %v165
    %v167 = vadd.f32 %v166, 0.112945676
    %v168 = vmul.f32 %v150, %v167
    %v169 = vadd.f32 %v168, 0.4994258
    %v170 = vmul.f32 %v150, %v169
    %v171 = vadd.f32 %v170, 1.0
    %v172 = vrcp.pop %v171
    %v173 = vmul.f32 %v171, %v172
    %v174 = vsub.f32 1.0, %v173
    %v175 = vmul.f32 %v172, %v174
    %v176 = vadd.f32 %v172, %v175
    %vm177 = vweird.f32 %v171
    %vm178 = vweird.f32 %v172
    %vm179 = vmor %vm177, %vm178
    %v180 = vsel %vm179, %v172, %v176
    %v181 = vand.u32 2147483647, %v171
    %vm182 = vcmp.eq.f32.partialorder %v181, 8.507059e+37
    %v183 = vand.u32 %v171, 2147483648
    %v184 = vor.u32 1.1754944e-38, %v183
    %v185 = vsel %vm182, %v184, %v180
    %v186 = vmul.f32 %v161, %v185
    %v187 = vmin.f32 %v186, 1.0
    %v188 = vmax.f32 %v187, -1.0
    %v189 = vmul.f32 %v148, %v148
    %v190 = vmin.f32 16.0, %v189
    %v191 = vmul.f32 %v190, 2.1237322e-06
    %v192 = vadd.f32 %v191, 0.00028619796
    %v193 = vmul.f32 %v190, %v192
    %v194 = vadd.f32 %v193, 0.0036580483
    %v195 = vmul.f32 %v190, %v194
    %v196 = vadd.f32 %v195, 0.05243302
    %v197 = vmul.f32 %v190, %v196
    %v198 = vadd.f32 %v197, 0.18741608
    %v199 = vmul.f32 %v190, %v198
    %v200 = vadd.f32 %v199, 1.1283791
    %v201 = vmul.f32 %v148, %v200
    %v202 = vmul.f32 %v190, 3.8918573e-05
    %v203 = vadd.f32 %v202, 0.001143296
    %v204 = vmul.f32 %v190, %v203
    %v205 = vadd.f32 %v204, 0.014752088
    %v206 = vmul.f32 %v190, %v205
    %v207 = vadd.f32 %v206, 0.112945676
    %v208 = vmul.f32 %v190, %v207
    %v209 = vadd.f32 %v208, 0.4994258
    %v210 = vmul.f32 %v190, %v209
    %v211 = vadd.f32 %v210, 1.0
    %v212 = vrcp.pop %v211
    %v213 = vmul.f32 %v211, %v212
    %v214 = vsub.f32 1.0, %v213
    %v215 = vmul.f32 %v212, %v214
    %v216 = vadd.f32 %v212, %v215
    %vm217 = vweird.f32 %v211
    %vm218 = vweird.f32 %v212
    %vm219 = vmor %vm217, %vm218
    %v220 = vsel %vm219, %v212, %v216
    %v221 = vand.u32 2147483647, %v211
    %vm222 = vcmp.eq.f32.partialorder %v221, 8.507059e+37
    %v223 = vand.u32 %v211, 2147483648
    %v224 = vor.u32 1.1754944e-38, %v223
    %v225 = vsel %vm222, %v224, %v220
    %v226 = vmul.f32 %v201, %v225
    %v227 = vmin.f32 %v226, 1.0
    %v228 = vmax.f32 %v227, -1.0
    %v229 = vadd.f32 %v188, 1.0
    %v230 = vadd.f32 %v228, 1.0
    %v231 = vmul.f32 %v145, %v229
    %v232 = vmul.f32 %v146, %v230
    %v233 = vpack.c.bf16 %v232, %v231
    %v234 = vld [vmem:[#allocation2] sm:$0xff]
    %v235 = vld [vmem:[#allocation2 + $0x8] sm:$0xff]
    %v236 = vld [vmem:[%s5] sm:$0xf]
    %v237 = vld [vmem:[%s5 + $0x4] sm:$0xf]
    %v238 = vld [vmem:[%s5 + $0x8] sm:$0xf]
    %v239 = vld [vmem:[%s5 + $0xc] sm:$0xf]
    %v240 = vld [vmem:[%s5 + $0x10] sm:$0xf]
    %v241 = vld [vmem:[%s5 + $0x14] sm:$0xf]
    %v242 = vld [vmem:[%s5 + $0x18] sm:$0xf]
    %v243 = vld [vmem:[%s5 + $0x1c] sm:$0xf]
    %v252 = vunpack.c.l.b16 %v236
    %v253 = vunpack.c.l.b16 %v237
    %v254 = vunpack.c.l.b16 %v238
    %v255 = vunpack.c.l.b16 %v239
    %v256 = vunpack.c.l.b16 %v240
    %v257 = vunpack.c.l.b16 %v241
    %v258 = vunpack.c.l.b16 %v242
    %v259 = vunpack.c.l.b16 %v243
    %v260 = vpack.c.b16 %v253, %v252
    %v261 = vpack.c.b16 %v255, %v254
    %v262 = vpack.c.b16 %v257, %v256
    %v263 = vpack.c.b16 %v259, %v258
    %vm268 = vcmask 523264
    %v270 = vsel %vm268, %v233, 0
    %272 = vmatpush.bf16.msra.mxu0 0
    %273 = vmatpush.bf16.msra.mxu0 0
    %274 = vmatpush.bf16.msra.mxu0 0
    %275 = vmatpush.bf16.msra.mxu0 0
    %276 = vmatpush.bf16.msra.mxu0 %v263
    %277 = vmatpush.bf16.msra.mxu0 %v262
    %278 = vmatpush.bf16.msra.mxu0 %v261
    %279 = vmatpush.bf16.msra.mxu0 %v260
    %280 = vmatmul.bf16.gmra.mxu0 %v270
    %v281 = vpop.f32.mrf.mxu0
    %v282 = vadd.f32 0.0, %v281
    %v283 = vpop.f32.mrf.mxu0
    %v284 = vadd.f32 0.0, %v283
    %285 = vdwg.mxu0
    %v286 = vadd.f32 %v234, %v282
    %v287 = vadd.f32 %v235, %v284
    %288 = vst.msk [vmem:[#allocation2] sm:$0xff] %vm71, %v286
    %289 = vst.msk [vmem:[#allocation2 + $0x8] sm:$0xff] %vm71, %v287
    %v290 = vld [vmem:[#allocation3] sm:$0xff]
    %v291 = vld [vmem:[#allocation3 + $0x8] sm:$0xff]
    %v292 = vld [vmem:[%s7] sm:$0xf]
    %v293 = vld [vmem:[%s7 + $0x4] sm:$0xf]
    %v294 = vld [vmem:[%s7 + $0x8] sm:$0xf]
    %v295 = vld [vmem:[%s7 + $0xc] sm:$0xf]
    %v296 = vld [vmem:[%s7 + $0x10] sm:$0xf]
    %v297 = vld [vmem:[%s7 + $0x14] sm:$0xf]
    %v298 = vld [vmem:[%s7 + $0x18] sm:$0xf]
    %v299 = vld [vmem:[%s7 + $0x1c] sm:$0xf]
    %v308 = vunpack.c.l.b16 %v292
    %v309 = vunpack.c.l.b16 %v293
    %v310 = vunpack.c.l.b16 %v294
    %v311 = vunpack.c.l.b16 %v295
    %v312 = vunpack.c.l.b16 %v296
    %v313 = vunpack.c.l.b16 %v297
    %v314 = vunpack.c.l.b16 %v298
    %v315 = vunpack.c.l.b16 %v299
    %v316 = vpack.c.b16 %v309, %v308
    %v317 = vpack.c.b16 %v311, %v310
    %v318 = vpack.c.b16 %v313, %v312
    %v319 = vpack.c.b16 %v315, %v314
    %324 = vmatpush.bf16.msra.mxu0 0
    %325 = vmatpush.bf16.msra.mxu0 0
    %326 = vmatpush.bf16.msra.mxu0 0
    %327 = vmatpush.bf16.msra.mxu0 0
    %328 = vmatpush.bf16.msra.mxu0 %v319
    %329 = vmatpush.bf16.msra.mxu0 %v318
    %330 = vmatpush.bf16.msra.mxu0 %v317
    %331 = vmatpush.bf16.msra.mxu0 %v316
    %332 = vmatmul.bf16.gmra.mxu0 %v270
    %v333 = vpop.f32.mrf.mxu0
    %v334 = vadd.f32 0.0, %v333
    %v335 = vpop.f32.mrf.mxu0
    %v336 = vadd.f32 0.0, %v335
    %337 = vdwg.mxu0
    %v338 = vadd.f32 %v290, %v334
    %v339 = vadd.f32 %v291, %v336
    %340 = vst.msk [vmem:[#allocation3] sm:$0xff] %vm91, %v338
    %341 = vst.msk [vmem:[#allocation3 + $0x8] sm:$0xff] %vm91, %v339
    // Predicated region
    $region42: #{tpu_custom_call.1} parent=1 // pred_check
      %p342 = pneg %p34
    $region43: #{tpu_custom_call.1} parent=1 // pred_check_branch
      %344 = sbr.rel (%p342) target = $region45
    $region44: #{tpu_custom_call.1} parent=1 // pred_region
      %v345 = vld [vmem:[#allocation2] sm:$0xff]
      %v346 = vld [vmem:[#allocation2 + $0x8] sm:$0xff]
      %v347 = vld [vmem:[#allocation3] sm:$0xff]
      %v348 = vld [vmem:[#allocation3 + $0x8] sm:$0xff]
      %v349 = vpack.c.bf16 %v348, %v347
      %v350 = vld [vmem:[%s8] sm:$0x3]
      %v352 = vsel %vm91, %v349, 0
      %v355 = vsel %vm95, %v350, 0
      %357 = vmatpush.bf16.msra.mxu0 0
      %358 = vmatpush.bf16.msra.mxu0 0
      %359 = vmatpush.bf16.msra.mxu0 0
      %360 = vmatpush.bf16.msra.mxu0 0
      %361 = vmatpush.bf16.msra.mxu0 0
      %362 = vmatpush.bf16.msra.mxu0 0
      %363 = vmatpush.bf16.msra.mxu0 0
      %364 = vmatpush.bf16.msra.mxu0 %v355
      %365 = vmatmul.bf16.gmra.mxu0 %v352
      %v366 = vpop.f32.mrf.mxu0
      %v367 = vadd.f32 0.0, %v366
      %v368 = vpop.f32.mrf.mxu0
      %v369 = vadd.f32 0.0, %v368
      %370 = vdwg.mxu0
      %v371 = vadd.f32 %v345, %v367
      %v372 = vadd.f32 %v346, %v369
      %v373 = vld [vmem:[%s6] sm:$0x1]
      %v375 = vperm.slane %v373, 0
      %v377 = vadd.f32 %v371, %v375
      %v378 = vadd.f32 %v372, %v375
      %379 = vst.msk [vmem:[#allocation4] sm:$0xff] %vm71, %v377
      %380 = vst.msk [vmem:[#allocation4 + $0x8] sm:$0xff] %vm71, %v378
    $region45: #{tpu_custom_call.1} parent=1 // pred_fallthru
      _
    // Predicated region
    $region46: #{tpu_custom_call.1} parent=1 // pred_check
      _
    $region47: #{tpu_custom_call.1} parent=1 // pred_check_branch
      %382 = sbr.rel (0) target = $region49
    $region48: #{tpu_custom_call.1} parent=1 // pred_region
      %384 = vsyncadd [#allocation5], 0
      %s385 = sshll.u32 [#allocation4], 4
      %s386 = int_to_ptr.vmem [resolvable:$true] %s385
      %s387 = sshll.u32 %s9, 4
      %s388 = int_to_ptr.hbm [resolvable:$true] %s387
      %393 = dma.vmem_to_hbm [thread:$0]  %s386, 256, %s388, [#allocation5], 128, 128, 8
    $region49: #{tpu_custom_call.1} parent=1 // pred_fallthru
      _
    // Predicated region
    $region50: #{tpu_custom_call.1} parent=1 // pred_check
      _
    $region51: #{tpu_custom_call.1} parent=1 // pred_check_branch
      %395 = sbr.rel (0) target = $region53
    $region52: #{tpu_custom_call.1} parent=1 // pred_region
      %397 = dma.done [#allocation5], 256
    $region53: #{tpu_custom_call.1} parent=1 // pred_fallthru
      _
    %398 = vsyncpa [#allocation5], 1

</llo_original>
